<compile_context>
chip_gen: v7x
topology: tpu7x:2x2x1
jax: 0.10.0
libtpu: 0.0.40
codegen_flags: <defaults>
</compile_context>

<pallas_src>
import functools

import jax
import jax.numpy as jnp
from jax.experimental import pallas as pl
from jax.experimental.pallas import tpu as pltpu


def _round_up(x, m):
    return (x + m - 1) // m * m


def _conv_kernel(x_ref, w_ref, b_ref, o_ref, *, C, KS, Wp, Lp):
    """One batch element per grid step; sublane-packed VPU convolution.

    x_ref: (1, C, Lin) VMEM  zero-padded input, flattened per channel
    w_ref: (C, C*KS*KS) VMEM f32  rows = cout, cols = (ci*KS + kh)*KS + kw
    b_ref: (C, 1)       VMEM f32  bias column
    o_ref: (1, C, Lp)   VMEM      output in padded-flat coordinates
    """
    w = w_ref[...]                                       # (C, C*KS*KS), one load
    # Bias folded into the accumulator init (single broadcast, hoisted).
    acc = jnp.broadcast_to(b_ref[...], (C, Lp))          # (C, Lp) f32

    for ci in range(C):
        # Load + cast the whole padded channel row exactly once.
        row = x_ref[0, ci:ci + 1, :].astype(jnp.float32)  # (1, Lin)
        part = None
        for kh in range(KS):
            for kw in range(KS):
                s = kh * Wp + kw                          # flat shift of this tap
                t = (ci * KS + kh) * KS + kw
                # (C,1) weight column (lane-broadcast) * (1,Lp) shifted tap
                # (sublane-broadcast) -> one (C, Lp) VPU FMA per tap.
                contrib = w[:, t:t + 1] * row[:, s:s + Lp]
                part = contrib if part is None else part + contrib
        acc = acc + part                                  # C independent chains -> ILP

    # Single lane-dense, unmasked (C, Lp) store (Lp is a multiple of 128).
    o_ref[0, :, :] = acc.astype(o_ref.dtype)
    # "+ 0" from the PyTorch forward is a no-op.


def rep_block_org(x_nchw, weight, bias):
    """x_nchw: (N, C, H, W); weight: (Cout, Cin, KS, KS); bias: (Cout,)."""
    N, C, H, W = x_nchw.shape
    Cout, Cin, KS, KS2 = weight.shape
    assert Cin == C and Cout == C and KS == KS2
    assert KS % 2 == 1, "'same' padding here requires an odd kernel size"
    pad = KS // 2
    Hp, Wp = H + 2 * pad, W + 2 * pad
    s_max = (KS - 1) * Wp + (KS - 1)            # largest flat tap shift
    Lp = _round_up(H * Wp, 128)                 # lane-dense output length
    Lin = _round_up(max(Hp * Wp, s_max + Lp), 128)  # input row length (all taps in-bounds)

    # Zero-pad spatially, free contiguous reshape to the flat per-channel
    # layout, then pad the flat tail so taps for the junk output lanes stay
    # in-bounds (both pads fuse into one XLA fusion; no transposes anywhere).
    x_pad = jnp.pad(x_nchw, ((0, 0), (0, 0), (pad, pad), (pad, pad)))
    x_flat = x_pad.reshape(N, C, Hp * Wp)
    if Lin > Hp * Wp:
        x_flat = jnp.pad(x_flat, ((0, 0), (0, 0), (0, Lin - Hp * Wp)))

    w2d = weight.reshape(C, C * KS * KS).astype(jnp.float32)
    b2d = bias.reshape(C, 1).astype(jnp.float32)

    kernel = functools.partial(_conv_kernel, C=C, KS=KS, Wp=Wp, Lp=Lp)

    out_flat = pl.pallas_call(
        kernel,
        out_shape=jax.ShapeDtypeStruct((N, C, Lp), x_nchw.dtype),
        grid=(N,),
        in_specs=[
            pl.BlockSpec((1, C, Lin), lambda n: (n, 0, 0)),
            pl.BlockSpec((C, C * KS * KS), lambda n: (0, 0)),   # resident (same block)
            pl.BlockSpec((C, 1), lambda n: (0, 0)),             # resident (same block)
        ],
        out_specs=pl.BlockSpec((1, C, Lp), lambda n: (n, 0, 0)),
        compiler_params=pltpu.CompilerParams(
            dimension_semantics=("parallel",)),
    )(x_flat, w2d, b2d)

    # Undo the padded-flat coordinates with ONE fused strided slice:
    # drop the junk tail, view as rows, drop the right halo columns.
    out = out_flat[:, :, :H * Wp].reshape(N, C, H, Wp)[:, :, :, :W]
    return out


if __name__ == "__main__":
    # Small shapes consistent with the module: conv(n_feats, n_feats, 3, bias=True)
    N, C, H, W = 2, 4, 16, 16
    KS = 3

    key = jax.random.PRNGKey(0)
    kx, kw, kb = jax.random.split(key, 3)
    x = jax.random.normal(kx, (N, C, H, W), dtype=jnp.float32)
    weight = jax.random.normal(kw, (C, C, KS, KS), dtype=jnp.float32) * 0.1
    bias = jax.random.normal(kb, (C,), dtype=jnp.float32) * 0.1

    out = rep_block_org(x, weight, bias)
    out = jax.block_until_ready(out)

    # Cross-check against XLA's conv (same semantics as the PyTorch module).
    ref = jax.lax.conv_general_dilated(
        x, weight, window_strides=(1, 1), padding="SAME",
        dimension_numbers=("NCHW", "OIHW", "NCHW"),
    ) + bias[None, :, None, None]
    assert out.shape == (N, C, H, W)
    assert jnp.allclose(out, ref, atol=1e-3, rtol=1e-3), "mismatch vs reference"

    print("KERNEL_OK")
</pallas_src>

<mosaic_0001>
module attributes {stable_mosaic.version = 11 : i64} {
  func.func @_conv_kernel(%arg0: i32, %arg1: memref<1x4x512xf32, #tpu.memory_space<vmem>>, %arg2: memref<4x36xf32, #tpu.memory_space<vmem>>, %arg3: memref<4x1xf32, #tpu.memory_space<vmem>>, %arg4: memref<1x4x384xf32, #tpu.memory_space<vmem>>) attributes {dimension_semantics = [#tpu.dimension_semantics<parallel>], iteration_bounds = array<i64: 2>, scalar_prefetch = 0 : i64, scratch_operands = 0 : i64, tpu.core_type = #tpu.core_type<tc>, window_params = [{transform_indices = @transform_0, window_bounds = array<i64: 1, 4, 512>}, {pipeline_mode = #tpu.pipeline_mode<synchronous>, transform_indices = @transform_1, window_bounds = array<i64: 4, 36>}, {pipeline_mode = #tpu.pipeline_mode<synchronous>, transform_indices = @transform_2, window_bounds = array<i64: 4, 1>}, {transform_indices = @transform_3, window_bounds = array<i64: 1, 4, 384>}]} {
    %c0 = arith.constant 0 : index
    %c0_0 = arith.constant 0 : index
    %0 = vector.load %arg2[%c0, %c0_0] : memref<4x36xf32, #tpu.memory_space<vmem>>, vector<4x36xf32>
    %c0_1 = arith.constant 0 : index
    %c0_2 = arith.constant 0 : index
    %1 = vector.load %arg3[%c0_1, %c0_2] : memref<4x1xf32, #tpu.memory_space<vmem>>, vector<4x1xf32>
    %2 = vector.shape_cast %1 : vector<4x1xf32> to vector<4x1xf32>
    %3 = vector.broadcast %2 : vector<4x1xf32> to vector<4x384xf32>
    %c0_3 = arith.constant 0 : index
    %c0_4 = arith.constant 0 : index
    %c0_5 = arith.constant 0 : index
    %4 = vector.load %arg1[%c0_3, %c0_4, %c0_5] : memref<1x4x512xf32, #tpu.memory_space<vmem>>, vector<1x1x512xf32>
    %5 = vector.shape_cast %4 : vector<1x1x512xf32> to vector<1x512xf32>
    %6 = vector.extract_strided_slice %0 {offsets = [0, 0], sizes = [4, 1], strides = [1, 1]} : vector<4x36xf32> to vector<4x1xf32>
    %7 = vector.extract_strided_slice %5 {offsets = [0, 0], sizes = [1, 384], strides = [1, 1]} : vector<1x512xf32> to vector<1x384xf32>
    %8 = vector.broadcast %6 : vector<4x1xf32> to vector<4x384xf32>
    %9 = vector.broadcast %7 : vector<1x384xf32> to vector<4x384xf32>
    %10 = arith.mulf %8, %9 : vector<4x384xf32>
    %11 = vector.extract_strided_slice %0 {offsets = [0, 1], sizes = [4, 1], strides = [1, 1]} : vector<4x36xf32> to vector<4x1xf32>
    %12 = vector.extract_strided_slice %5 {offsets = [0, 1], sizes = [1, 384], strides = [1, 1]} : vector<1x512xf32> to vector<1x384xf32>
    %13 = vector.broadcast %11 : vector<4x1xf32> to vector<4x384xf32>
    %14 = vector.broadcast %12 : vector<1x384xf32> to vector<4x384xf32>
    %15 = arith.mulf %13, %14 : vector<4x384xf32>
    %16 = arith.addf %10, %15 : vector<4x384xf32>
    %17 = vector.extract_strided_slice %0 {offsets = [0, 2], sizes = [4, 1], strides = [1, 1]} : vector<4x36xf32> to vector<4x1xf32>
    %18 = vector.extract_strided_slice %5 {offsets = [0, 2], sizes = [1, 384], strides = [1, 1]} : vector<1x512xf32> to vector<1x384xf32>
    %19 = vector.broadcast %17 : vector<4x1xf32> to vector<4x384xf32>
    %20 = vector.broadcast %18 : vector<1x384xf32> to vector<4x384xf32>
    %21 = arith.mulf %19, %20 : vector<4x384xf32>
    %22 = arith.addf %16, %21 : vector<4x384xf32>
    %23 = vector.extract_strided_slice %0 {offsets = [0, 3], sizes = [4, 1], strides = [1, 1]} : vector<4x36xf32> to vector<4x1xf32>
    %24 = vector.extract_strided_slice %5 {offsets = [0, 18], sizes = [1, 384], strides = [1, 1]} : vector<1x512xf32> to vector<1x384xf32>
    %25 = vector.broadcast %23 : vector<4x1xf32> to vector<4x384xf32>
    %26 = vector.broadcast %24 : vector<1x384xf32> to vector<4x384xf32>
    %27 = arith.mulf %25, %26 : vector<4x384xf32>
    %28 = arith.addf %22, %27 : vector<4x384xf32>
    %29 = vector.extract_strided_slice %0 {offsets = [0, 4], sizes = [4, 1], strides = [1, 1]} : vector<4x36xf32> to vector<4x1xf32>
    %30 = vector.extract_strided_slice %5 {offsets = [0, 19], sizes = [1, 384], strides = [1, 1]} : vector<1x512xf32> to vector<1x384xf32>
    %31 = vector.broadcast %29 : vector<4x1xf32> to vector<4x384xf32>
    %32 = vector.broadcast %30 : vector<1x384xf32> to vector<4x384xf32>
    %33 = arith.mulf %31, %32 : vector<4x384xf32>
    %34 = arith.addf %28, %33 : vector<4x384xf32>
    %35 = vector.extract_strided_slice %0 {offsets = [0, 5], sizes = [4, 1], strides = [1, 1]} : vector<4x36xf32> to vector<4x1xf32>
    %36 = vector.extract_strided_slice %5 {offsets = [0, 20], sizes = [1, 384], strides = [1, 1]} : vector<1x512xf32> to vector<1x384xf32>
    %37 = vector.broadcast %35 : vector<4x1xf32> to vector<4x384xf32>
    %38 = vector.broadcast %36 : vector<1x384xf32> to vector<4x384xf32>
    %39 = arith.mulf %37, %38 : vector<4x384xf32>
    %40 = arith.addf %34, %39 : vector<4x384xf32>
    %41 = vector.extract_strided_slice %0 {offsets = [0, 6], sizes = [4, 1], strides = [1, 1]} : vector<4x36xf32> to vector<4x1xf32>
    %42 = vector.extract_strided_slice %5 {offsets = [0, 36], sizes = [1, 384], strides = [1, 1]} : vector<1x512xf32> to vector<1x384xf32>
    %43 = vector.broadcast %41 : vector<4x1xf32> to vector<4x384xf32>
    %44 = vector.broadcast %42 : vector<1x384xf32> to vector<4x384xf32>
    %45 = arith.mulf %43, %44 : vector<4x384xf32>
    %46 = arith.addf %40, %45 : vector<4x384xf32>
    %47 = vector.extract_strided_slice %0 {offsets = [0, 7], sizes = [4, 1], strides = [1, 1]} : vector<4x36xf32> to vector<4x1xf32>
    %48 = vector.extract_strided_slice %5 {offsets = [0, 37], sizes = [1, 384], strides = [1, 1]} : vector<1x512xf32> to vector<1x384xf32>
    %49 = vector.broadcast %47 : vector<4x1xf32> to vector<4x384xf32>
    %50 = vector.broadcast %48 : vector<1x384xf32> to vector<4x384xf32>
    %51 = arith.mulf %49, %50 : vector<4x384xf32>
    %52 = arith.addf %46, %51 : vector<4x384xf32>
    %53 = vector.extract_strided_slice %0 {offsets = [0, 8], sizes = [4, 1], strides = [1, 1]} : vector<4x36xf32> to vector<4x1xf32>
    %54 = vector.extract_strided_slice %5 {offsets = [0, 38], sizes = [1, 384], strides = [1, 1]} : vector<1x512xf32> to vector<1x384xf32>
    %55 = vector.broadcast %53 : vector<4x1xf32> to vector<4x384xf32>
    %56 = vector.broadcast %54 : vector<1x384xf32> to vector<4x384xf32>
    %57 = arith.mulf %55, %56 : vector<4x384xf32>
    %58 = arith.addf %52, %57 : vector<4x384xf32>
    %59 = arith.addf %3, %58 : vector<4x384xf32>
    %c0_6 = arith.constant 0 : index
    %c1 = arith.constant 1 : index
    %c0_7 = arith.constant 0 : index
    %60 = vector.load %arg1[%c0_6, %c1, %c0_7] : memref<1x4x512xf32, #tpu.memory_space<vmem>>, vector<1x1x512xf32>
    %61 = vector.shape_cast %60 : vector<1x1x512xf32> to vector<1x512xf32>
    %62 = vector.extract_strided_slice %0 {offsets = [0, 9], sizes = [4, 1], strides = [1, 1]} : vector<4x36xf32> to vector<4x1xf32>
    %63 = vector.extract_strided_slice %61 {offsets = [0, 0], sizes = [1, 384], strides = [1, 1]} : vector<1x512xf32> to vector<1x384xf32>
    %64 = vector.broadcast %62 : vector<4x1xf32> to vector<4x384xf32>
    %65 = vector.broadcast %63 : vector<1x384xf32> to vector<4x384xf32>
    %66 = arith.mulf %64, %65 : vector<4x384xf32>
    %67 = vector.extract_strided_slice %0 {offsets = [0, 10], sizes = [4, 1], strides = [1, 1]} : vector<4x36xf32> to vector<4x1xf32>
    %68 = vector.extract_strided_slice %61 {offsets = [0, 1], sizes = [1, 384], strides = [1, 1]} : vector<1x512xf32> to vector<1x384xf32>
    %69 = vector.broadcast %67 : vector<4x1xf32> to vector<4x384xf32>
    %70 = vector.broadcast %68 : vector<1x384xf32> to vector<4x384xf32>
    %71 = arith.mulf %69, %70 : vector<4x384xf32>
    %72 = arith.addf %66, %71 : vector<4x384xf32>
    %73 = vector.extract_strided_slice %0 {offsets = [0, 11], sizes = [4, 1], strides = [1, 1]} : vector<4x36xf32> to vector<4x1xf32>
    %74 = vector.extract_strided_slice %61 {offsets = [0, 2], sizes = [1, 384], strides = [1, 1]} : vector<1x512xf32> to vector<1x384xf32>
    %75 = vector.broadcast %73 : vector<4x1xf32> to vector<4x384xf32>
    %76 = vector.broadcast %74 : vector<1x384xf32> to vector<4x384xf32>
    %77 = arith.mulf %75, %76 : vector<4x384xf32>
    %78 = arith.addf %72, %77 : vector<4x384xf32>
    %79 = vector.extract_strided_slice %0 {offsets = [0, 12], sizes = [4, 1], strides = [1, 1]} : vector<4x36xf32> to vector<4x1xf32>
    %80 = vector.extract_strided_slice %61 {offsets = [0, 18], sizes = [1, 384], strides = [1, 1]} : vector<1x512xf32> to vector<1x384xf32>
    %81 = vector.broadcast %79 : vector<4x1xf32> to vector<4x384xf32>
    %82 = vector.broadcast %80 : vector<1x384xf32> to vector<4x384xf32>
    %83 = arith.mulf %81, %82 : vector<4x384xf32>
    %84 = arith.addf %78, %83 : vector<4x384xf32>
    %85 = vector.extract_strided_slice %0 {offsets = [0, 13], sizes = [4, 1], strides = [1, 1]} : vector<4x36xf32> to vector<4x1xf32>
    %86 = vector.extract_strided_slice %61 {offsets = [0, 19], sizes = [1, 384], strides = [1, 1]} : vector<1x512xf32> to vector<1x384xf32>
    %87 = vector.broadcast %85 : vector<4x1xf32> to vector<4x384xf32>
    %88 = vector.broadcast %86 : vector<1x384xf32> to vector<4x384xf32>
    %89 = arith.mulf %87, %88 : vector<4x384xf32>
    %90 = arith.addf %84, %89 : vector<4x384xf32>
    %91 = vector.extract_strided_slice %0 {offsets = [0, 14], sizes = [4, 1], strides = [1, 1]} : vector<4x36xf32> to vector<4x1xf32>
    %92 = vector.extract_strided_slice %61 {offsets = [0, 20], sizes = [1, 384], strides = [1, 1]} : vector<1x512xf32> to vector<1x384xf32>
    %93 = vector.broadcast %91 : vector<4x1xf32> to vector<4x384xf32>
    %94 = vector.broadcast %92 : vector<1x384xf32> to vector<4x384xf32>
    %95 = arith.mulf %93, %94 : vector<4x384xf32>
    %96 = arith.addf %90, %95 : vector<4x384xf32>
    %97 = vector.extract_strided_slice %0 {offsets = [0, 15], sizes = [4, 1], strides = [1, 1]} : vector<4x36xf32> to vector<4x1xf32>
    %98 = vector.extract_strided_slice %61 {offsets = [0, 36], sizes = [1, 384], strides = [1, 1]} : vector<1x512xf32> to vector<1x384xf32>
    %99 = vector.broadcast %97 : vector<4x1xf32> to vector<4x384xf32>
    %100 = vector.broadcast %98 : vector<1x384xf32> to vector<4x384xf32>
    %101 = arith.mulf %99, %100 : vector<4x384xf32>
    %102 = arith.addf %96, %101 : vector<4x384xf32>
    %103 = vector.extract_strided_slice %0 {offsets = [0, 16], sizes = [4, 1], strides = [1, 1]} : vector<4x36xf32> to vector<4x1xf32>
    %104 = vector.extract_strided_slice %61 {offsets = [0, 37], sizes = [1, 384], strides = [1, 1]} : vector<1x512xf32> to vector<1x384xf32>
    %105 = vector.broadcast %103 : vector<4x1xf32> to vector<4x384xf32>
    %106 = vector.broadcast %104 : vector<1x384xf32> to vector<4x384xf32>
    %107 = arith.mulf %105, %106 : vector<4x384xf32>
    %108 = arith.addf %102, %107 : vector<4x384xf32>
    %109 = vector.extract_strided_slice %0 {offsets = [0, 17], sizes = [4, 1], strides = [1, 1]} : vector<4x36xf32> to vector<4x1xf32>
    %110 = vector.extract_strided_slice %61 {offsets = [0, 38], sizes = [1, 384], strides = [1, 1]} : vector<1x512xf32> to vector<1x384xf32>
    %111 = vector.broadcast %109 : vector<4x1xf32> to vector<4x384xf32>
    %112 = vector.broadcast %110 : vector<1x384xf32> to vector<4x384xf32>
    %113 = arith.mulf %111, %112 : vector<4x384xf32>
    %114 = arith.addf %108, %113 : vector<4x384xf32>
    %115 = arith.addf %59, %114 : vector<4x384xf32>
    %c0_8 = arith.constant 0 : index
    %c2 = arith.constant 2 : index
    %c0_9 = arith.constant 0 : index
    %116 = vector.load %arg1[%c0_8, %c2, %c0_9] : memref<1x4x512xf32, #tpu.memory_space<vmem>>, vector<1x1x512xf32>
    %117 = vector.shape_cast %116 : vector<1x1x512xf32> to vector<1x512xf32>
    %118 = vector.extract_strided_slice %0 {offsets = [0, 18], sizes = [4, 1], strides = [1, 1]} : vector<4x36xf32> to vector<4x1xf32>
    %119 = vector.extract_strided_slice %117 {offsets = [0, 0], sizes = [1, 384], strides = [1, 1]} : vector<1x512xf32> to vector<1x384xf32>
    %120 = vector.broadcast %118 : vector<4x1xf32> to vector<4x384xf32>
    %121 = vector.broadcast %119 : vector<1x384xf32> to vector<4x384xf32>
    %122 = arith.mulf %120, %121 : vector<4x384xf32>
    %123 = vector.extract_strided_slice %0 {offsets = [0, 19], sizes = [4, 1], strides = [1, 1]} : vector<4x36xf32> to vector<4x1xf32>
    %124 = vector.extract_strided_slice %117 {offsets = [0, 1], sizes = [1, 384], strides = [1, 1]} : vector<1x512xf32> to vector<1x384xf32>
    %125 = vector.broadcast %123 : vector<4x1xf32> to vector<4x384xf32>
    %126 = vector.broadcast %124 : vector<1x384xf32> to vector<4x384xf32>
    %127 = arith.mulf %125, %126 : vector<4x384xf32>
    %128 = arith.addf %122, %127 : vector<4x384xf32>
    %129 = vector.extract_strided_slice %0 {offsets = [0, 20], sizes = [4, 1], strides = [1, 1]} : vector<4x36xf32> to vector<4x1xf32>
    %130 = vector.extract_strided_slice %117 {offsets = [0, 2], sizes = [1, 384], strides = [1, 1]} : vector<1x512xf32> to vector<1x384xf32>
    %131 = vector.broadcast %129 : vector<4x1xf32> to vector<4x384xf32>
    %132 = vector.broadcast %130 : vector<1x384xf32> to vector<4x384xf32>
    %133 = arith.mulf %131, %132 : vector<4x384xf32>
    %134 = arith.addf %128, %133 : vector<4x384xf32>
    %135 = vector.extract_strided_slice %0 {offsets = [0, 21], sizes = [4, 1], strides = [1, 1]} : vector<4x36xf32> to vector<4x1xf32>
    %136 = vector.extract_strided_slice %117 {offsets = [0, 18], sizes = [1, 384], strides = [1, 1]} : vector<1x512xf32> to vector<1x384xf32>
    %137 = vector.broadcast %135 : vector<4x1xf32> to vector<4x384xf32>
    %138 = vector.broadcast %136 : vector<1x384xf32> to vector<4x384xf32>
    %139 = arith.mulf %137, %138 : vector<4x384xf32>
    %140 = arith.addf %134, %139 : vector<4x384xf32>
    %141 = vector.extract_strided_slice %0 {offsets = [0, 22], sizes = [4, 1], strides = [1, 1]} : vector<4x36xf32> to vector<4x1xf32>
    %142 = vector.extract_strided_slice %117 {offsets = [0, 19], sizes = [1, 384], strides = [1, 1]} : vector<1x512xf32> to vector<1x384xf32>
    %143 = vector.broadcast %141 : vector<4x1xf32> to vector<4x384xf32>
    %144 = vector.broadcast %142 : vector<1x384xf32> to vector<4x384xf32>
    %145 = arith.mulf %143, %144 : vector<4x384xf32>
    %146 = arith.addf %140, %145 : vector<4x384xf32>
    %147 = vector.extract_strided_slice %0 {offsets = [0, 23], sizes = [4, 1], strides = [1, 1]} : vector<4x36xf32> to vector<4x1xf32>
    %148 = vector.extract_strided_slice %117 {offsets = [0, 20], sizes = [1, 384], strides = [1, 1]} : vector<1x512xf32> to vector<1x384xf32>
    %149 = vector.broadcast %147 : vector<4x1xf32> to vector<4x384xf32>
    %150 = vector.broadcast %148 : vector<1x384xf32> to vector<4x384xf32>
    %151 = arith.mulf %149, %150 : vector<4x384xf32>
    %152 = arith.addf %146, %151 : vector<4x384xf32>
    %153 = vector.extract_strided_slice %0 {offsets = [0, 24], sizes = [4, 1], strides = [1, 1]} : vector<4x36xf32> to vector<4x1xf32>
    %154 = vector.extract_strided_slice %117 {offsets = [0, 36], sizes = [1, 384], strides = [1, 1]} : vector<1x512xf32> to vector<1x384xf32>
    %155 = vector.broadcast %153 : vector<4x1xf32> to vector<4x384xf32>
    %156 = vector.broadcast %154 : vector<1x384xf32> to vector<4x384xf32>
    %157 = arith.mulf %155, %156 : vector<4x384xf32>
    %158 = arith.addf %152, %157 : vector<4x384xf32>
    %159 = vector.extract_strided_slice %0 {offsets = [0, 25], sizes = [4, 1], strides = [1, 1]} : vector<4x36xf32> to vector<4x1xf32>
    %160 = vector.extract_strided_slice %117 {offsets = [0, 37], sizes = [1, 384], strides = [1, 1]} : vector<1x512xf32> to vector<1x384xf32>
    %161 = vector.broadcast %159 : vector<4x1xf32> to vector<4x384xf32>
    %162 = vector.broadcast %160 : vector<1x384xf32> to vector<4x384xf32>
    %163 = arith.mulf %161, %162 : vector<4x384xf32>
    %164 = arith.addf %158, %163 : vector<4x384xf32>
    %165 = vector.extract_strided_slice %0 {offsets = [0, 26], sizes = [4, 1], strides = [1, 1]} : vector<4x36xf32> to vector<4x1xf32>
    %166 = vector.extract_strided_slice %117 {offsets = [0, 38], sizes = [1, 384], strides = [1, 1]} : vector<1x512xf32> to vector<1x384xf32>
    %167 = vector.broadcast %165 : vector<4x1xf32> to vector<4x384xf32>
    %168 = vector.broadcast %166 : vector<1x384xf32> to vector<4x384xf32>
    %169 = arith.mulf %167, %168 : vector<4x384xf32>
    %170 = arith.addf %164, %169 : vector<4x384xf32>
    %171 = arith.addf %115, %170 : vector<4x384xf32>
    %c0_10 = arith.constant 0 : index
    %c3 = arith.constant 3 : index
    %c0_11 = arith.constant 0 : index
    %172 = vector.load %arg1[%c0_10, %c3, %c0_11] : memref<1x4x512xf32, #tpu.memory_space<vmem>>, vector<1x1x512xf32>
    %173 = vector.shape_cast %172 : vector<1x1x512xf32> to vector<1x512xf32>
    %174 = vector.extract_strided_slice %0 {offsets = [0, 27], sizes = [4, 1], strides = [1, 1]} : vector<4x36xf32> to vector<4x1xf32>
    %175 = vector.extract_strided_slice %173 {offsets = [0, 0], sizes = [1, 384], strides = [1, 1]} : vector<1x512xf32> to vector<1x384xf32>
    %176 = vector.broadcast %174 : vector<4x1xf32> to vector<4x384xf32>
    %177 = vector.broadcast %175 : vector<1x384xf32> to vector<4x384xf32>
    %178 = arith.mulf %176, %177 : vector<4x384xf32>
    %179 = vector.extract_strided_slice %0 {offsets = [0, 28], sizes = [4, 1], strides = [1, 1]} : vector<4x36xf32> to vector<4x1xf32>
    %180 = vector.extract_strided_slice %173 {offsets = [0, 1], sizes = [1, 384], strides = [1, 1]} : vector<1x512xf32> to vector<1x384xf32>
    %181 = vector.broadcast %179 : vector<4x1xf32> to vector<4x384xf32>
    %182 = vector.broadcast %180 : vector<1x384xf32> to vector<4x384xf32>
    %183 = arith.mulf %181, %182 : vector<4x384xf32>
    %184 = arith.addf %178, %183 : vector<4x384xf32>
    %185 = vector.extract_strided_slice %0 {offsets = [0, 29], sizes = [4, 1], strides = [1, 1]} : vector<4x36xf32> to vector<4x1xf32>
    %186 = vector.extract_strided_slice %173 {offsets = [0, 2], sizes = [1, 384], strides = [1, 1]} : vector<1x512xf32> to vector<1x384xf32>
    %187 = vector.broadcast %185 : vector<4x1xf32> to vector<4x384xf32>
    %188 = vector.broadcast %186 : vector<1x384xf32> to vector<4x384xf32>
    %189 = arith.mulf %187, %188 : vector<4x384xf32>
    %190 = arith.addf %184, %189 : vector<4x384xf32>
    %191 = vector.extract_strided_slice %0 {offsets = [0, 30], sizes = [4, 1], strides = [1, 1]} : vector<4x36xf32> to vector<4x1xf32>
    %192 = vector.extract_strided_slice %173 {offsets = [0, 18], sizes = [1, 384], strides = [1, 1]} : vector<1x512xf32> to vector<1x384xf32>
    %193 = vector.broadcast %191 : vector<4x1xf32> to vector<4x384xf32>
    %194 = vector.broadcast %192 : vector<1x384xf32> to vector<4x384xf32>
    %195 = arith.mulf %193, %194 : vector<4x384xf32>
    %196 = arith.addf %190, %195 : vector<4x384xf32>
    %197 = vector.extract_strided_slice %0 {offsets = [0, 31], sizes = [4, 1], strides = [1, 1]} : vector<4x36xf32> to vector<4x1xf32>
    %198 = vector.extract_strided_slice %173 {offsets = [0, 19], sizes = [1, 384], strides = [1, 1]} : vector<1x512xf32> to vector<1x384xf32>
    %199 = vector.broadcast %197 : vector<4x1xf32> to vector<4x384xf32>
    %200 = vector.broadcast %198 : vector<1x384xf32> to vector<4x384xf32>
    %201 = arith.mulf %199, %200 : vector<4x384xf32>
    %202 = arith.addf %196, %201 : vector<4x384xf32>
    %203 = vector.extract_strided_slice %0 {offsets = [0, 32], sizes = [4, 1], strides = [1, 1]} : vector<4x36xf32> to vector<4x1xf32>
    %204 = vector.extract_strided_slice %173 {offsets = [0, 20], sizes = [1, 384], strides = [1, 1]} : vector<1x512xf32> to vector<1x384xf32>
    %205 = vector.broadcast %203 : vector<4x1xf32> to vector<4x384xf32>
    %206 = vector.broadcast %204 : vector<1x384xf32> to vector<4x384xf32>
    %207 = arith.mulf %205, %206 : vector<4x384xf32>
    %208 = arith.addf %202, %207 : vector<4x384xf32>
    %209 = vector.extract_strided_slice %0 {offsets = [0, 33], sizes = [4, 1], strides = [1, 1]} : vector<4x36xf32> to vector<4x1xf32>
    %210 = vector.extract_strided_slice %173 {offsets = [0, 36], sizes = [1, 384], strides = [1, 1]} : vector<1x512xf32> to vector<1x384xf32>
    %211 = vector.broadcast %209 : vector<4x1xf32> to vector<4x384xf32>
    %212 = vector.broadcast %210 : vector<1x384xf32> to vector<4x384xf32>
    %213 = arith.mulf %211, %212 : vector<4x384xf32>
    %214 = arith.addf %208, %213 : vector<4x384xf32>
    %215 = vector.extract_strided_slice %0 {offsets = [0, 34], sizes = [4, 1], strides = [1, 1]} : vector<4x36xf32> to vector<4x1xf32>
    %216 = vector.extract_strided_slice %173 {offsets = [0, 37], sizes = [1, 384], strides = [1, 1]} : vector<1x512xf32> to vector<1x384xf32>
    %217 = vector.broadcast %215 : vector<4x1xf32> to vector<4x384xf32>
    %218 = vector.broadcast %216 : vector<1x384xf32> to vector<4x384xf32>
    %219 = arith.mulf %217, %218 : vector<4x384xf32>
    %220 = arith.addf %214, %219 : vector<4x384xf32>
    %221 = vector.extract_strided_slice %0 {offsets = [0, 35], sizes = [4, 1], strides = [1, 1]} : vector<4x36xf32> to vector<4x1xf32>
    %222 = vector.extract_strided_slice %173 {offsets = [0, 38], sizes = [1, 384], strides = [1, 1]} : vector<1x512xf32> to vector<1x384xf32>
    %223 = vector.broadcast %221 : vector<4x1xf32> to vector<4x384xf32>
    %224 = vector.broadcast %222 : vector<1x384xf32> to vector<4x384xf32>
    %225 = arith.mulf %223, %224 : vector<4x384xf32>
    %226 = arith.addf %220, %225 : vector<4x384xf32>
    %227 = arith.addf %171, %226 : vector<4x384xf32>
    %c0_12 = arith.constant 0 : index
    %c0_13 = arith.constant 0 : index
    %c0_14 = arith.constant 0 : index
    %228 = vector.load %arg4[%c0_12, %c0_13, %c0_14] : memref<1x4x384xf32, #tpu.memory_space<vmem>>, vector<1x4x384xf32>
    %229 = vector.shape_cast %228 : vector<1x4x384xf32> to vector<4x384xf32>
    %230 = vector.shape_cast %227 : vector<4x384xf32> to vector<1x4x384xf32>
    tpu.vector_store %arg4[%c0_12, %c0_13, %c0_14], %230 {strides = array<i32>} : memref<1x4x384xf32, #tpu.memory_space<vmem>>, vector<1x4x384xf32>,
    return
  }
  func.func @transform_0(%arg0: i32) -> (i32, i32, i32) {
    %c0_i32 = arith.constant 0 : i32
    %c0_i32_0 = arith.constant 0 : i32
    %c0_i32_1 = arith.constant 0 : i32
    return %arg0, %c0_i32, %c0_i32_0 : i32, i32, i32
  }
  func.func @transform_1(%arg0: i32) -> (i32, i32) {
    %c0_i32 = arith.constant 0 : i32
    %c0_i32_0 = arith.constant 0 : i32
    %c0_i32_1 = arith.constant 0 : i32
    return %c0_i32, %c0_i32_0 : i32, i32
  }
  func.func @transform_2(%arg0: i32) -> (i32, i32) {
    %c0_i32 = arith.constant 0 : i32
    %c0_i32_0 = arith.constant 0 : i32
    %c0_i32_1 = arith.constant 0 : i32
    return %c0_i32, %c0_i32_0 : i32, i32
  }
  func.func @transform_3(%arg0: i32) -> (i32, i32, i32) {
    %c0_i32 = arith.constant 0 : i32
    %c0_i32_0 = arith.constant 0 : i32
    %c0_i32_1 = arith.constant 0 : i32
    return %arg0, %c0_i32, %c0_i32_0 : i32, i32, i32
  }
}

</mosaic_0001>

<llo_original>
// kernel: tpu_custom_call.1
$region0: #{tpu_custom_call.1}
  #allocation0 [shape = 'u32[]', space=smem, size = 0x4, offset = 0x4, fixed_abs, tag = 'smem constant byte address 0x4 - core index']
  #allocation1 [shape = 'u32[144,128]{1,0:T(1,128)}', space=vmem, size = 0x12000, scoped, tag = 'internal scratch']
  %s0 = inlined_call_operand.hbm [shape: f32[2,4,512], index: 0, kind: input, shape index: {}]
  %s1 = inlined_call_operand.vmem [shape: f32[4,36], index: 1, kind: input, shape index: {}]
  %s2 = inlined_call_operand.vmem [shape: f32[4,1], index: 2, kind: input, shape index: {}]
  %s3 = inlined_call_operand.hbm [shape: f32[2,4,384], index: 3, kind: output, shape index: {}]
  %s4 = sld [smem:[#allocation0]]
  $region49: #{tpu_custom_call.1} parent=0
    _
  %s6 = ssub.s32 1, %s4
  %s7 = scalar_select 0, %s6, %s4
  $region1: #{tpu_custom_call.1} parent=0
    #allocation2 [shape = 'u8[16384]{0}', space=vmem, size = 0x4000, scoped, tag = 'input window, operand 0']
    #allocation3 [shape = 's32[2]{0}', space=sflag, size = 0x8, scoped, tag = 'scoped memory for tpu_custom_call.1']
    #allocation4 [shape = 's32[2]{0}', space=sflag, size = 0x8, scoped, tag = 'scoped memory for tpu_custom_call.1']
    #allocation5 [shape = 'u8[12288]{0}', space=vmem, size = 0x3000, scoped, tag = 'output window, operand 0']
    %8 = vsyncpa [#allocation3], 0
    %s9 = scalar_lea.sflag [#allocation3], 1
    %10 = vsyncpa %s9, 0
    %11 = vsyncpa [#allocation4], 0
    %s12 = scalar_lea.sflag [#allocation4], 1
    %13 = vsyncpa %s12, 0
    loop: start=0, step=1, limit=4
    $region2: #{tpu_custom_call.1} parent=1 // loop_pre_header
      _
    $region3: #{tpu_custom_call.1} parent=1 // loop_header
      %s15 = sphi 0, %s19
      %p16 = scmp.ge.s32.totalorder %s15, 4
      %s25 = sphi 0, %s27
      %s28 = sphi 0, %s25
      %s29 = sphi 0, %s28
      %s45 = sphi 0, %s29
      %s49 = sphi 0, %s49
      %s51 = sphi 0, %s49
      %s52 = sphi 0, %s51
      %s66 = sphi 0, %s52
      %s70 = sphi 0, %s70
      %s72 = sphi 0, %s70
      %s73 = sphi 0, %s72
      %s87 = sphi 0, %s73
      %s93 = sphi 0, %s95
      %s96 = sphi 0, %s93
      %s97 = sphi 0, %s96
      %s113 = sphi 0, %s97
    $region4: #{tpu_custom_call.1} parent=1 // loop_header_branch
      %18 = sbr.rel (%p16) target = $region8
    $region5: #{tpu_custom_call.1} parent=1 // loop_body
      %s20 = ssub.s32 %s15, 1
      %s21 = ssub.s32 %s15, 2
      %s22 = sadd.s32 %s15, 1
      %s23 = ssub.s32 %s15, %s22
      %p24 = scmp.eq.s32.totalorder %s23, 0
      %s26 = sadd.s32 %s25, 1
      %s27 = scalar_select %p24, %s25, %s26
      %p30 = pneg %p24
      %p31 = scmp.eq.s32.totalorder %s15, 1
      %p32 = por %p30, %p31
      %p33 = scmp.ne.s32.totalorder %s25, %s28
      %p34 = scmp.eq.s32.totalorder %s15, 0
      %p35 = por %p33, %p34
      %p36 = scmp.ne.s32.totalorder %s25, %s28
      %p37 = scmp.eq.s32.totalorder %s20, 1
      %p38 = por %p36, %p37
      %p39 = scmp.ne.s32.totalorder %s28, %s29
      %p40 = scmp.eq.s32.totalorder %s20, 0
      %p41 = por %p39, %p40
      %p42 = scmp.ne.s32.totalorder %s28, %s29
      %p43 = scmp.eq.s32.totalorder %s21, 1
      %p44 = por %p42, %p43
      %p46 = scmp.ne.s32.totalorder %s29, %s45
      %p47 = scmp.eq.s32.totalorder %s21, 0
      %p48 = por %p46, %p47
      %s50 = sadd.s32 %s49, 1
      %p53 = scmp.eq.s32.totalorder %s15, 1
      %p54 = scmp.ne.s32.totalorder %s49, %s51
      %p55 = scmp.eq.s32.totalorder %s15, 0
      %p56 = por %p54, %p55
      %p57 = scmp.ne.s32.totalorder %s49, %s51
      %p58 = scmp.eq.s32.totalorder %s20, 1
      %p59 = por %p57, %p58
      %p60 = scmp.ne.s32.totalorder %s51, %s52
      %p61 = scmp.eq.s32.totalorder %s20, 0
      %p62 = por %p60, %p61
      %p63 = scmp.ne.s32.totalorder %s51, %s52
      %p64 = scmp.eq.s32.totalorder %s21, 1
      %p65 = por %p63, %p64
      %p67 = scmp.ne.s32.totalorder %s52, %s66
      %p68 = scmp.eq.s32.totalorder %s21, 0
      %p69 = por %p67, %p68
      %s71 = sadd.s32 %s70, 1
      %p74 = scmp.eq.s32.totalorder %s15, 1
      %p75 = scmp.ne.s32.totalorder %s70, %s72
      %p76 = scmp.eq.s32.totalorder %s15, 0
      %p77 = por %p75, %p76
      %p78 = scmp.ne.s32.totalorder %s70, %s72
      %p79 = scmp.eq.s32.totalorder %s20, 1
      %p80 = por %p78, %p79
      %p81 = scmp.ne.s32.totalorder %s72, %s73
      %p82 = scmp.eq.s32.totalorder %s20, 0
      %p83 = por %p81, %p82
      %p84 = scmp.ne.s32.totalorder %s72, %s73
      %p85 = scmp.eq.s32.totalorder %s21, 1
      %p86 = por %p84, %p85
      %p88 = scmp.ne.s32.totalorder %s73, %s87
      %p89 = scmp.eq.s32.totalorder %s21, 0
      %p90 = por %p88, %p89
      %s91 = ssub.s32 %s15, %s22
      %p92 = scmp.eq.s32.totalorder %s91, 0
      %s94 = sadd.s32 %s93, 1
      %s95 = scalar_select %p92, %s93, %s94
      %p98 = pneg %p92
      %p99 = scmp.eq.s32.totalorder %s15, 1
      %p100 = por %p98, %p99
      %p101 = scmp.ne.s32.totalorder %s93, %s96
      %p102 = scmp.eq.s32.totalorder %s15, 0
      %p103 = por %p101, %p102
      %p104 = scmp.ne.s32.totalorder %s93, %s96
      %p105 = scmp.eq.s32.totalorder %s20, 1
      %p106 = por %p104, %p105
      %p107 = scmp.ne.s32.totalorder %s96, %s97
      %p108 = scmp.eq.s32.totalorder %s20, 0
      %p109 = por %p107, %p108
      %p110 = scmp.ne.s32.totalorder %s96, %s97
      %p111 = scmp.eq.s32.totalorder %s21, 1
      %p112 = por %p110, %p111
      %p114 = scmp.ne.s32.totalorder %s97, %s113
      %p115 = scmp.eq.s32.totalorder %s21, 0
      %p116 = por %p114, %p115
      %p117 = scmp.le.s32.totalorder 1, %s15
      %p118 = scmp.lt.s32.totalorder %s15, 3
      %p119 = pnand %p117, %p118
      %p120 = pneg %p119
      // Predicated region
      $region9: #{tpu_custom_call.1} parent=5 // pred_check
        _
      $region10: #{tpu_custom_call.1} parent=5 // pred_check_branch
        %122 = sbr.rel (%p119) target = $region12
      $region11: #{tpu_custom_call.1} parent=5 // pred_region
        %s123 = ssub.s32 %s15, 1
        // Predicated region
        $region13: #{tpu_custom_call.1} parent=11 // pred_check
          %p124 = pneg %p62
        $region14: #{tpu_custom_call.1} parent=11 // pred_check_branch
          %126 = sbr.rel (%p124) target = $region16
        $region15: #{tpu_custom_call.1} parent=11 // pred_region
          _
        $region16: #{tpu_custom_call.1} parent=11 // pred_fallthru
          _
        // Predicated region
        $region17: #{tpu_custom_call.1} parent=11 // pred_check
          %p127 = pneg %p83
        $region18: #{tpu_custom_call.1} parent=11 // pred_check_branch
          %129 = sbr.rel (%p127) target = $region20
        $region19: #{tpu_custom_call.1} parent=11 // pred_region
          _
        $region20: #{tpu_custom_call.1} parent=11 // pred_fallthru
          _
      $region12: #{tpu_custom_call.1} parent=5 // pred_fallthru
        _
      %p130 = scmp.lt.s32.totalorder %s15, 2
      // Predicated region
      $region21: #{tpu_custom_call.1} parent=5 // pred_check
        %p131 = pneg %p130
      $region22: #{tpu_custom_call.1} parent=5 // pred_check_branch
        %133 = sbr.rel (%p131) target = $region24
      $region23: #{tpu_custom_call.1} parent=5 // pred_region
        // Predicated region
        $region25: #{tpu_custom_call.1} parent=23 // pred_check
          %p134 = pneg %p35
        $region26: #{tpu_custom_call.1} parent=23 // pred_check_branch
          %136 = sbr.rel (%p134) target = $region28
        $region27: #{tpu_custom_call.1} parent=23 // pred_region
          %s137 = sand.u32 %s25, 1
          %s138 = scalar_lea.sflag [#allocation3], %s137
          %s139 = sand.u32 %s25, 1
          %s140 = smul.addr %s139, 16
          %s141 = scalar_lea.vmem [#allocation2], %s140
          %s143 = ssub.s32 256, 256
          %144 = vsyncadd %s138, %s143
          %s145 = smul.addr %s15, 4
          %s146 = smul.addr %s145, 64
          %s147 = scalar_lea.hbm %s0, %s146
          %s149 = sshll.u32 %s141, 4
          %s150 = int_to_ptr.vmem [resolvable:$true] %s149
          %152 = dma.hbm_to_vmem [thread:$0]  %s147, 256, %s150, %s138
        $region28: #{tpu_custom_call.1} parent=23 // pred_fallthru
          _
      $region24: #{tpu_custom_call.1} parent=5 // pred_fallthru
        _
      %p153 = scmp.le.s32.totalorder 1, %s15
      %p154 = scmp.lt.s32.totalorder %s15, 3
      %p155 = pnand %p153, %p154
      %p156 = pneg %p155
      // Predicated region
      $region29: #{tpu_custom_call.1} parent=5 // pred_check
        _
      $region30: #{tpu_custom_call.1} parent=5 // pred_check_branch
        %158 = sbr.rel (%p155) target = $region32
      $region31: #{tpu_custom_call.1} parent=5 // pred_region
        %s159 = ssub.s32 %s15, 1
        %s160 = sand.u32 %s28, 1
        %s161 = scalar_lea.sflag [#allocation3], %s160
        %s162 = sand.u32 %s28, 1
        %s163 = smul.addr %s162, 16
        %s164 = scalar_lea.vmem [#allocation2], %s163
        // Predicated region
        $region33: #{tpu_custom_call.1} parent=31 // pred_check
          %p165 = pneg %p41
        $region34: #{tpu_custom_call.1} parent=31 // pred_check_branch
          %167 = sbr.rel (%p165) target = $region36
        $region35: #{tpu_custom_call.1} parent=31 // pred_region
          %168 = dma.done %s161, 256
        $region36: #{tpu_custom_call.1} parent=31 // pred_fallthru
          _
        %s169 = sand.u32 %s28, 1
        %s170 = scalar_lea.sflag [#allocation3], %s169
        %s171 = sand.u32 %s28, 1
        %s172 = smul.addr %s171, 16
        %s173 = scalar_lea.vmem [#allocation2], %s172
        %p174 = pneg %p41
        %p175 = pneg %p38
        %p176 = pneg %p62
        %p177 = pneg %p59
        %p178 = pneg %p83
        %p179 = pneg %p80
        %p180 = pneg %p109
        %p181 = pneg %p106
        %s182 = sand.u32 %s96, 1
        %s183 = scalar_lea.sflag [#allocation4], %s182
        %s184 = sand.u32 %s96, 1
        %s185 = smul.addr %s184, 12
        %s186 = scalar_lea.vmem [#allocation5], %s185
        %v187 = vld [vmem:[%s1] sm:$0xf]
        %v188 = vld [vmem:[%s2] sm:$0xf]
        %190 = vset.pattern.permute.xlu0 0
        %191 = vperm.xlu0 %190, %v188
        %v192 = vpop.permute.xlu0 %191
        %v194 = vld [vmem:[%s164] ss:$4 sm:$0xf]
        %196 = vset.pattern.permute.xlu0 0
        %197 = vperm.xlu0 %196, %v187
        %v198 = vpop.permute.xlu0 %197
        %v201 = vlaneseq
        %v202 = vshrl.u32 %v201, 7
        %v203 = vsub.s32 0, %v202
        %v204 = vrot.slane %v194, %v203
        %v205 = vlaneseq
        %v206 = vshrl.u32 %v205, 7
        %v207 = vsub.s32 1, %v206
        %v208 = vrot.slane %v194, %v207
        %v209 = vlaneseq
        %v210 = vshrl.u32 %v209, 7
        %v211 = vsub.s32 2, %v210
        %v212 = vrot.slane %v194, %v211
        %v216 = vmul.f32 %v198, %v204
        %v217 = vmul.f32 %v198, %v208
        %v218 = vmul.f32 %v198, %v212
        %219 = vset.pattern.permute.xlu0 1
        %220 = vperm.xlu0 %219, %v187
        %v221 = vpop.permute.xlu0 %220
        %v223 = vlaneseq
        %v224 = vshrl.u32 %v223, 7
        %v225 = vsub.s32 3, %v224
        %v226 = vrot.slane %v194, %v225
        %v228 = vmul.f32 %v221, %v204
        %v229 = vmul.f32 %v221, %v208
        %v230 = vmul.f32 %v221, %v212
        %v231 = vmul.f32 %v221, %v226
        %236 = vrot.lane.b32.xlu0 %v228, 127
        %v237 = vpop.permute.xlu0 %236
        %238 = vrot.lane.b32.xlu0 %v229, 127
        %v239 = vpop.permute.xlu0 %238
        %240 = vrot.lane.b32.xlu0 %v230, 127
        %v241 = vpop.permute.xlu0 %240
        %242 = vrot.lane.b32.xlu0 %v231, 127
        %v243 = vpop.permute.xlu0 %242
        %vm244 = vcmask 1039360
        %v245 = vsel %vm244, %v237, %v239
        %v246 = vsel %vm244, %v239, %v241
        %v247 = vsel %vm244, %v241, %v243
        %v251 = vadd.f32 %v216, %v245
        %v252 = vadd.f32 %v217, %v246
        %v253 = vadd.f32 %v218, %v247
        %254 = vset.pattern.permute.xlu0 2
        %255 = vperm.xlu0 %254, %v187
        %v256 = vpop.permute.xlu0 %255
        %v258 = vmul.f32 %v256, %v204
        %v259 = vmul.f32 %v256, %v208
        %v260 = vmul.f32 %v256, %v212
        %v261 = vmul.f32 %v256, %v226
        %266 = vrot.lane.b32.xlu0 %v258, 126
        %v267 = vpop.permute.xlu0 %266
        %268 = vrot.lane.b32.xlu0 %v259, 126
        %v269 = vpop.permute.xlu0 %268
        %270 = vrot.lane.b32.xlu0 %v260, 126
        %v271 = vpop.permute.xlu0 %270
        %272 = vrot.lane.b32.xlu0 %v261, 126
        %v273 = vpop.permute.xlu0 %272
        %vm274 = vcmask 1031168
        %v275 = vsel %vm274, %v267, %v269
        %v276 = vsel %vm274, %v269, %v271
        %v277 = vsel %vm274, %v271, %v273
        %v281 = vadd.f32 %v251, %v275
        %v282 = vadd.f32 %v252, %v276
        %v283 = vadd.f32 %v253, %v277
        %284 = vset.pattern.permute.xlu0 3
        %285 = vperm.xlu0 %284, %v187
        %v286 = vpop.permute.xlu0 %285
        %v288 = vmul.f32 %v286, %v204
        %v289 = vmul.f32 %v286, %v208
        %v290 = vmul.f32 %v286, %v212
        %v291 = vmul.f32 %v286, %v226
        %296 = vrot.lane.b32.xlu0 %v288, 110
        %v297 = vpop.permute.xlu0 %296
        %298 = vrot.lane.b32.xlu0 %v289, 110
        %v299 = vpop.permute.xlu0 %298
        %300 = vrot.lane.b32.xlu0 %v290, 110
        %v301 = vpop.permute.xlu0 %300
        %302 = vrot.lane.b32.xlu0 %v291, 110
        %v303 = vpop.permute.xlu0 %302
        %vm304 = vcmask 900096
        %v305 = vsel %vm304, %v297, %v299
        %v306 = vsel %vm304, %v299, %v301
        %v307 = vsel %vm304, %v301, %v303
        %v311 = vadd.f32 %v281, %v305
        %v312 = vadd.f32 %v282, %v306
        %v313 = vadd.f32 %v283, %v307
        %314 = vset.pattern.permute.xlu0 4
        %315 = vperm.xlu0 %314, %v187
        %v316 = vpop.permute.xlu0 %315
        %v318 = vmul.f32 %v316, %v204
        %v319 = vmul.f32 %v316, %v208
        %v320 = vmul.f32 %v316, %v212
        %v321 = vmul.f32 %v316, %v226
        %326 = vrot.lane.b32.xlu0 %v318, 109
        %v327 = vpop.permute.xlu0 %326
        %328 = vrot.lane.b32.xlu0 %v319, 109
        %v329 = vpop.permute.xlu0 %328
        %330 = vrot.lane.b32.xlu0 %v320, 109
        %v331 = vpop.permute.xlu0 %330
        %332 = vrot.lane.b32.xlu0 %v321, 109
        %v333 = vpop.permute.xlu0 %332
        %vm334 = vcmask 891904
        %v335 = vsel %vm334, %v327, %v329
        %v336 = vsel %vm334, %v329, %v331
        %v337 = vsel %vm334, %v331, %v333
        %v341 = vadd.f32 %v311, %v335
        %v342 = vadd.f32 %v312, %v336
        %v343 = vadd.f32 %v313, %v337
        %344 = vset.pattern.permute.xlu0 5
        %345 = vperm.xlu0 %344, %v187
        %v346 = vpop.permute.xlu0 %345
        %v348 = vmul.f32 %v346, %v204
        %v349 = vmul.f32 %v346, %v208
        %v350 = vmul.f32 %v346, %v212
        %v351 = vmul.f32 %v346, %v226
        %356 = vrot.lane.b32.xlu0 %v348, 108
        %v357 = vpop.permute.xlu0 %356
        %358 = vrot.lane.b32.xlu0 %v349, 108
        %v359 = vpop.permute.xlu0 %358
        %360 = vrot.lane.b32.xlu0 %v350, 108
        %v361 = vpop.permute.xlu0 %360
        %362 = vrot.lane.b32.xlu0 %v351, 108
        %v363 = vpop.permute.xlu0 %362
        %vm364 = vcmask 883712
        %v365 = vsel %vm364, %v357, %v359
        %v366 = vsel %vm364, %v359, %v361
        %v367 = vsel %vm364, %v361, %v363
        %v371 = vadd.f32 %v341, %v365
        %v372 = vadd.f32 %v342, %v366
        %v373 = vadd.f32 %v343, %v367
        %374 = vset.pattern.permute.xlu0 6
        %375 = vperm.xlu0 %374, %v187
        %v376 = vpop.permute.xlu0 %375
        %v378 = vmul.f32 %v376, %v204
        %v379 = vmul.f32 %v376, %v208
        %v380 = vmul.f32 %v376, %v212
        %v381 = vmul.f32 %v376, %v226
        %386 = vrot.lane.b32.xlu0 %v378, 92
        %v387 = vpop.permute.xlu0 %386
        %388 = vrot.lane.b32.xlu0 %v379, 92
        %v389 = vpop.permute.xlu0 %388
        %390 = vrot.lane.b32.xlu0 %v380, 92
        %v391 = vpop.permute.xlu0 %390
        %392 = vrot.lane.b32.xlu0 %v381, 92
        %v393 = vpop.permute.xlu0 %392
        %vm394 = vcmask 752640
        %v395 = vsel %vm394, %v387, %v389
        %v396 = vsel %vm394, %v389, %v391
        %v397 = vsel %vm394, %v391, %v393
        %v401 = vadd.f32 %v371, %v395
        %v402 = vadd.f32 %v372, %v396
        %v403 = vadd.f32 %v373, %v397
        %404 = vset.pattern.permute.xlu0 7
        %405 = vperm.xlu0 %404, %v187
        %v406 = vpop.permute.xlu0 %405
        %v408 = vmul.f32 %v406, %v204
        %v409 = vmul.f32 %v406, %v208
        %v410 = vmul.f32 %v406, %v212
        %v411 = vmul.f32 %v406, %v226
        %416 = vrot.lane.b32.xlu0 %v408, 91
        %v417 = vpop.permute.xlu0 %416
        %418 = vrot.lane.b32.xlu0 %v409, 91
        %v419 = vpop.permute.xlu0 %418
        %420 = vrot.lane.b32.xlu0 %v410, 91
        %v421 = vpop.permute.xlu0 %420
        %422 = vrot.lane.b32.xlu0 %v411, 91
        %v423 = vpop.permute.xlu0 %422
        %vm424 = vcmask 744448
        %v425 = vsel %vm424, %v417, %v419
        %v426 = vsel %vm424, %v419, %v421
        %v427 = vsel %vm424, %v421, %v423
        %v431 = vadd.f32 %v401, %v425
        %v432 = vadd.f32 %v402, %v426
        %v433 = vadd.f32 %v403, %v427
        %434 = vset.pattern.permute.xlu0 8
        %435 = vperm.xlu0 %434, %v187
        %v436 = vpop.permute.xlu0 %435
        %v438 = vmul.f32 %v436, %v204
        %v439 = vmul.f32 %v436, %v208
        %v440 = vmul.f32 %v436, %v212
        %v441 = vmul.f32 %v436, %v226
        %446 = vrot.lane.b32.xlu0 %v438, 90
        %v447 = vpop.permute.xlu0 %446
        %448 = vrot.lane.b32.xlu0 %v439, 90
        %v449 = vpop.permute.xlu0 %448
        %450 = vrot.lane.b32.xlu0 %v440, 90
        %v451 = vpop.permute.xlu0 %450
        %452 = vrot.lane.b32.xlu0 %v441, 90
        %v453 = vpop.permute.xlu0 %452
        %vm454 = vcmask 736256
        %v455 = vsel %vm454, %v447, %v449
        %v456 = vsel %vm454, %v449, %v451
        %v457 = vsel %vm454, %v451, %v453
        %v461 = vadd.f32 %v431, %v455
        %v462 = vadd.f32 %v432, %v456
        %v463 = vadd.f32 %v433, %v457
        %v464 = vadd.f32 %v192, %v461
        %v465 = vadd.f32 %v192, %v462
        %v466 = vadd.f32 %v192, %v463
        %s467 = scalar_lea.vmem %s164, 1 [#allocation2]
        %v468 = vld [vmem:[%s467] ss:$4 sm:$0xf]
        %469 = vset.pattern.permute.xlu0 9
        %470 = vperm.xlu0 %469, %v187
        %v471 = vpop.permute.xlu0 %470
        %v474 = vlaneseq
        %v475 = vshrl.u32 %v474, 7
        %v476 = vsub.s32 0, %v475
        %v477 = vrot.slane %v468, %v476
        %v478 = vlaneseq
        %v479 = vshrl.u32 %v478, 7
        %v480 = vsub.s32 1, %v479
        %v481 = vrot.slane %v468, %v480
        %v482 = vlaneseq
        %v483 = vshrl.u32 %v482, 7
        %v484 = vsub.s32 2, %v483
        %v485 = vrot.slane %v468, %v484
        %v489 = vmul.f32 %v471, %v477
        %v490 = vmul.f32 %v471, %v481
        %v491 = vmul.f32 %v471, %v485
        %492 = vset.pattern.permute.xlu0 10
        %493 = vperm.xlu0 %492, %v187
        %v494 = vpop.permute.xlu0 %493
        %v496 = vlaneseq
        %v497 = vshrl.u32 %v496, 7
        %v498 = vsub.s32 3, %v497
        %v499 = vrot.slane %v468, %v498
        %v501 = vmul.f32 %v494, %v477
        %v502 = vmul.f32 %v494, %v481
        %v503 = vmul.f32 %v494, %v485
        %v504 = vmul.f32 %v494, %v499
        %509 = vrot.lane.b32.xlu0 %v501, 127
        %v510 = vpop.permute.xlu0 %509
        %511 = vrot.lane.b32.xlu0 %v502, 127
        %v512 = vpop.permute.xlu0 %511
        %513 = vrot.lane.b32.xlu0 %v503, 127
        %v514 = vpop.permute.xlu0 %513
        %515 = vrot.lane.b32.xlu0 %v504, 127
        %v516 = vpop.permute.xlu0 %515
        %v517 = vsel %vm244, %v510, %v512
        %v518 = vsel %vm244, %v512, %v514
        %v519 = vsel %vm244, %v514, %v516
        %v523 = vadd.f32 %v489, %v517
        %v524 = vadd.f32 %v490, %v518
        %v525 = vadd.f32 %v491, %v519
        %526 = vset.pattern.permute.xlu0 11
        %527 = vperm.xlu0 %526, %v187
        %v528 = vpop.permute.xlu0 %527
        %v530 = vmul.f32 %v528, %v477
        %v531 = vmul.f32 %v528, %v481
        %v532 = vmul.f32 %v528, %v485
        %v533 = vmul.f32 %v528, %v499
        %538 = vrot.lane.b32.xlu0 %v530, 126
        %v539 = vpop.permute.xlu0 %538
        %540 = vrot.lane.b32.xlu0 %v531, 126
        %v541 = vpop.permute.xlu0 %540
        %542 = vrot.lane.b32.xlu0 %v532, 126
        %v543 = vpop.permute.xlu0 %542
        %544 = vrot.lane.b32.xlu0 %v533, 126
        %v545 = vpop.permute.xlu0 %544
        %v546 = vsel %vm274, %v539, %v541
        %v547 = vsel %vm274, %v541, %v543
        %v548 = vsel %vm274, %v543, %v545
        %v552 = vadd.f32 %v523, %v546
        %v553 = vadd.f32 %v524, %v547
        %v554 = vadd.f32 %v525, %v548
        %555 = vset.pattern.permute.xlu0 12
        %556 = vperm.xlu0 %555, %v187
        %v557 = vpop.permute.xlu0 %556
        %v559 = vmul.f32 %v557, %v477
        %v560 = vmul.f32 %v557, %v481
        %v561 = vmul.f32 %v557, %v485
        %v562 = vmul.f32 %v557, %v499
        %567 = vrot.lane.b32.xlu0 %v559, 110
        %v568 = vpop.permute.xlu0 %567
        %569 = vrot.lane.b32.xlu0 %v560, 110
        %v570 = vpop.permute.xlu0 %569
        %571 = vrot.lane.b32.xlu0 %v561, 110
        %v572 = vpop.permute.xlu0 %571
        %573 = vrot.lane.b32.xlu0 %v562, 110
        %v574 = vpop.permute.xlu0 %573
        %v575 = vsel %vm304, %v568, %v570
        %v576 = vsel %vm304, %v570, %v572
        %v577 = vsel %vm304, %v572, %v574
        %v581 = vadd.f32 %v552, %v575
        %v582 = vadd.f32 %v553, %v576
        %v583 = vadd.f32 %v554, %v577
        %584 = vset.pattern.permute.xlu0 13
        %585 = vperm.xlu0 %584, %v187
        %v586 = vpop.permute.xlu0 %585
        %v588 = vmul.f32 %v586, %v477
        %v589 = vmul.f32 %v586, %v481
        %v590 = vmul.f32 %v586, %v485
        %v591 = vmul.f32 %v586, %v499
        %596 = vrot.lane.b32.xlu0 %v588, 109
        %v597 = vpop.permute.xlu0 %596
        %598 = vrot.lane.b32.xlu0 %v589, 109
        %v599 = vpop.permute.xlu0 %598
        %600 = vrot.lane.b32.xlu0 %v590, 109
        %v601 = vpop.permute.xlu0 %600
        %602 = vrot.lane.b32.xlu0 %v591, 109
        %v603 = vpop.permute.xlu0 %602
        %v604 = vsel %vm334, %v597, %v599
        %v605 = vsel %vm334, %v599, %v601
        %v606 = vsel %vm334, %v601, %v603
        %v610 = vadd.f32 %v581, %v604
        %v611 = vadd.f32 %v582, %v605
        %v612 = vadd.f32 %v583, %v606
        %613 = vset.pattern.permute.xlu0 14
        %614 = vperm.xlu0 %613, %v187
        %v615 = vpop.permute.xlu0 %614
        %v617 = vmul.f32 %v615, %v477
        %v618 = vmul.f32 %v615, %v481
        %v619 = vmul.f32 %v615, %v485
        %v620 = vmul.f32 %v615, %v499
        %625 = vrot.lane.b32.xlu0 %v617, 108
        %v626 = vpop.permute.xlu0 %625
        %627 = vrot.lane.b32.xlu0 %v618, 108
        %v628 = vpop.permute.xlu0 %627
        %629 = vrot.lane.b32.xlu0 %v619, 108
        %v630 = vpop.permute.xlu0 %629
        %631 = vrot.lane.b32.xlu0 %v620, 108
        %v632 = vpop.permute.xlu0 %631
        %v633 = vsel %vm364, %v626, %v628
        %v634 = vsel %vm364, %v628, %v630
        %v635 = vsel %vm364, %v630, %v632
        %v639 = vadd.f32 %v610, %v633
        %v640 = vadd.f32 %v611, %v634
        %v641 = vadd.f32 %v612, %v635
        %642 = vset.pattern.permute.xlu0 15
        %643 = vperm.xlu0 %642, %v187
        %v644 = vpop.permute.xlu0 %643
        %v646 = vmul.f32 %v644, %v477
        %v647 = vmul.f32 %v644, %v481
        %v648 = vmul.f32 %v644, %v485
        %v649 = vmul.f32 %v644, %v499
        %654 = vrot.lane.b32.xlu0 %v646, 92
        %v655 = vpop.permute.xlu0 %654
        %656 = vrot.lane.b32.xlu0 %v647, 92
        %v657 = vpop.permute.xlu0 %656
        %658 = vrot.lane.b32.xlu0 %v648, 92
        %v659 = vpop.permute.xlu0 %658
        %660 = vrot.lane.b32.xlu0 %v649, 92
        %v661 = vpop.permute.xlu0 %660
        %v662 = vsel %vm394, %v655, %v657
        %v663 = vsel %vm394, %v657, %v659
        %v664 = vsel %vm394, %v659, %v661
        %v668 = vadd.f32 %v639, %v662
        %v669 = vadd.f32 %v640, %v663
        %v670 = vadd.f32 %v641, %v664
        %671 = vset.pattern.permute.xlu0 16
        %672 = vperm.xlu0 %671, %v187
        %v673 = vpop.permute.xlu0 %672
        %v675 = vmul.f32 %v673, %v477
        %v676 = vmul.f32 %v673, %v481
        %v677 = vmul.f32 %v673, %v485
        %v678 = vmul.f32 %v673, %v499
        %683 = vrot.lane.b32.xlu0 %v675, 91
        %v684 = vpop.permute.xlu0 %683
        %685 = vrot.lane.b32.xlu0 %v676, 91
        %v686 = vpop.permute.xlu0 %685
        %687 = vrot.lane.b32.xlu0 %v677, 91
        %v688 = vpop.permute.xlu0 %687
        %689 = vrot.lane.b32.xlu0 %v678, 91
        %v690 = vpop.permute.xlu0 %689
        %v691 = vsel %vm424, %v684, %v686
        %v692 = vsel %vm424, %v686, %v688
        %v693 = vsel %vm424, %v688, %v690
        %v697 = vadd.f32 %v668, %v691
        %v698 = vadd.f32 %v669, %v692
        %v699 = vadd.f32 %v670, %v693
        %700 = vset.pattern.permute.xlu0 17
        %701 = vperm.xlu0 %700, %v187
        %v702 = vpop.permute.xlu0 %701
        %v704 = vmul.f32 %v702, %v477
        %v705 = vmul.f32 %v702, %v481
        %v706 = vmul.f32 %v702, %v485
        %v707 = vmul.f32 %v702, %v499
        %712 = vrot.lane.b32.xlu0 %v704, 90
        %v713 = vpop.permute.xlu0 %712
        %714 = vrot.lane.b32.xlu0 %v705, 90
        %v715 = vpop.permute.xlu0 %714
        %716 = vrot.lane.b32.xlu0 %v706, 90
        %v717 = vpop.permute.xlu0 %716
        %718 = vrot.lane.b32.xlu0 %v707, 90
        %v719 = vpop.permute.xlu0 %718
        %v720 = vsel %vm454, %v713, %v715
        %v721 = vsel %vm454, %v715, %v717
        %v722 = vsel %vm454, %v717, %v719
        %v726 = vadd.f32 %v697, %v720
        %v727 = vadd.f32 %v698, %v721
        %v728 = vadd.f32 %v699, %v722
        %v729 = vadd.f32 %v464, %v726
        %v730 = vadd.f32 %v465, %v727
        %v731 = vadd.f32 %v466, %v728
        %s732 = scalar_lea.vmem %s164, 2 [#allocation2]
        %v733 = vld [vmem:[%s732] ss:$4 sm:$0xf]
        %734 = vset.pattern.permute.xlu0 18
        %735 = vperm.xlu0 %734, %v187
        %v736 = vpop.permute.xlu0 %735
        %v739 = vlaneseq
        %v740 = vshrl.u32 %v739, 7
        %v741 = vsub.s32 0, %v740
        %v742 = vrot.slane %v733, %v741
        %v743 = vlaneseq
        %v744 = vshrl.u32 %v743, 7
        %v745 = vsub.s32 1, %v744
        %v746 = vrot.slane %v733, %v745
        %v747 = vlaneseq
        %v748 = vshrl.u32 %v747, 7
        %v749 = vsub.s32 2, %v748
        %v750 = vrot.slane %v733, %v749
        %v754 = vmul.f32 %v736, %v742
        %v755 = vmul.f32 %v736, %v746
        %v756 = vmul.f32 %v736, %v750
        %757 = vset.pattern.permute.xlu0 19
        %758 = vperm.xlu0 %757, %v187
        %v759 = vpop.permute.xlu0 %758
        %v761 = vlaneseq
        %v762 = vshrl.u32 %v761, 7
        %v763 = vsub.s32 3, %v762
        %v764 = vrot.slane %v733, %v763
        %v766 = vmul.f32 %v759, %v742
        %v767 = vmul.f32 %v759, %v746
        %v768 = vmul.f32 %v759, %v750
        %v769 = vmul.f32 %v759, %v764
        %774 = vrot.lane.b32.xlu0 %v766, 127
        %v775 = vpop.permute.xlu0 %774
        %776 = vrot.lane.b32.xlu0 %v767, 127
        %v777 = vpop.permute.xlu0 %776
        %778 = vrot.lane.b32.xlu0 %v768, 127
        %v779 = vpop.permute.xlu0 %778
        %780 = vrot.lane.b32.xlu0 %v769, 127
        %v781 = vpop.permute.xlu0 %780
        %v782 = vsel %vm244, %v775, %v777
        %v783 = vsel %vm244, %v777, %v779
        %v784 = vsel %vm244, %v779, %v781
        %v788 = vadd.f32 %v754, %v782
        %v789 = vadd.f32 %v755, %v783
        %v790 = vadd.f32 %v756, %v784
        %791 = vset.pattern.permute.xlu0 20
        %792 = vperm.xlu0 %791, %v187
        %v793 = vpop.permute.xlu0 %792
        %v795 = vmul.f32 %v793, %v742
        %v796 = vmul.f32 %v793, %v746
        %v797 = vmul.f32 %v793, %v750
        %v798 = vmul.f32 %v793, %v764
        %803 = vrot.lane.b32.xlu0 %v795, 126
        %v804 = vpop.permute.xlu0 %803
        %805 = vrot.lane.b32.xlu0 %v796, 126
        %v806 = vpop.permute.xlu0 %805
        %807 = vrot.lane.b32.xlu0 %v797, 126
        %v808 = vpop.permute.xlu0 %807
        %809 = vrot.lane.b32.xlu0 %v798, 126
        %v810 = vpop.permute.xlu0 %809
        %v811 = vsel %vm274, %v804, %v806
        %v812 = vsel %vm274, %v806, %v808
        %v813 = vsel %vm274, %v808, %v810
        %v817 = vadd.f32 %v788, %v811
        %v818 = vadd.f32 %v789, %v812
        %v819 = vadd.f32 %v790, %v813
        %820 = vset.pattern.permute.xlu0 21
        %821 = vperm.xlu0 %820, %v187
        %v822 = vpop.permute.xlu0 %821
        %v824 = vmul.f32 %v822, %v742
        %v825 = vmul.f32 %v822, %v746
        %v826 = vmul.f32 %v822, %v750
        %v827 = vmul.f32 %v822, %v764
        %832 = vrot.lane.b32.xlu0 %v824, 110
        %v833 = vpop.permute.xlu0 %832
        %834 = vrot.lane.b32.xlu0 %v825, 110
        %v835 = vpop.permute.xlu0 %834
        %836 = vrot.lane.b32.xlu0 %v826, 110
        %v837 = vpop.permute.xlu0 %836
        %838 = vrot.lane.b32.xlu0 %v827, 110
        %v839 = vpop.permute.xlu0 %838
        %v840 = vsel %vm304, %v833, %v835
        %v841 = vsel %vm304, %v835, %v837
        %v842 = vsel %vm304, %v837, %v839
        %v846 = vadd.f32 %v817, %v840
        %v847 = vadd.f32 %v818, %v841
        %v848 = vadd.f32 %v819, %v842
        %849 = vset.pattern.permute.xlu0 22
        %850 = vperm.xlu0 %849, %v187
        %v851 = vpop.permute.xlu0 %850
        %v853 = vmul.f32 %v851, %v742
        %v854 = vmul.f32 %v851, %v746
        %v855 = vmul.f32 %v851, %v750
        %v856 = vmul.f32 %v851, %v764
        %861 = vrot.lane.b32.xlu0 %v853, 109
        %v862 = vpop.permute.xlu0 %861
        %863 = vrot.lane.b32.xlu0 %v854, 109
        %v864 = vpop.permute.xlu0 %863
        %865 = vrot.lane.b32.xlu0 %v855, 109
        %v866 = vpop.permute.xlu0 %865
        %867 = vrot.lane.b32.xlu0 %v856, 109
        %v868 = vpop.permute.xlu0 %867
        %v869 = vsel %vm334, %v862, %v864
        %v870 = vsel %vm334, %v864, %v866
        %v871 = vsel %vm334, %v866, %v868
        %v875 = vadd.f32 %v846, %v869
        %v876 = vadd.f32 %v847, %v870
        %v877 = vadd.f32 %v848, %v871
        %878 = vset.pattern.permute.xlu0 23
        %879 = vperm.xlu0 %878, %v187
        %v880 = vpop.permute.xlu0 %879
        %v882 = vmul.f32 %v880, %v742
        %v883 = vmul.f32 %v880, %v746
        %v884 = vmul.f32 %v880, %v750
        %v885 = vmul.f32 %v880, %v764
        %890 = vrot.lane.b32.xlu0 %v882, 108
        %v891 = vpop.permute.xlu0 %890
        %892 = vrot.lane.b32.xlu0 %v883, 108
        %v893 = vpop.permute.xlu0 %892
        %894 = vrot.lane.b32.xlu0 %v884, 108
        %v895 = vpop.permute.xlu0 %894
        %896 = vrot.lane.b32.xlu0 %v885, 108
        %v897 = vpop.permute.xlu0 %896
        %v898 = vsel %vm364, %v891, %v893
        %v899 = vsel %vm364, %v893, %v895
        %v900 = vsel %vm364, %v895, %v897
        %v904 = vadd.f32 %v875, %v898
        %v905 = vadd.f32 %v876, %v899
        %v906 = vadd.f32 %v877, %v900
        %907 = vset.pattern.permute.xlu0 24
        %908 = vperm.xlu0 %907, %v187
        %v909 = vpop.permute.xlu0 %908
        %v911 = vmul.f32 %v909, %v742
        %v912 = vmul.f32 %v909, %v746
        %v913 = vmul.f32 %v909, %v750
        %v914 = vmul.f32 %v909, %v764
        %919 = vrot.lane.b32.xlu0 %v911, 92
        %v920 = vpop.permute.xlu0 %919
        %921 = vrot.lane.b32.xlu0 %v912, 92
        %v922 = vpop.permute.xlu0 %921
        %923 = vrot.lane.b32.xlu0 %v913, 92
        %v924 = vpop.permute.xlu0 %923
        %925 = vrot.lane.b32.xlu0 %v914, 92
        %v926 = vpop.permute.xlu0 %925
        %v927 = vsel %vm394, %v920, %v922
        %v928 = vsel %vm394, %v922, %v924
        %v929 = vsel %vm394, %v924, %v926
        %v933 = vadd.f32 %v904, %v927
        %v934 = vadd.f32 %v905, %v928
        %v935 = vadd.f32 %v906, %v929
        %936 = vset.pattern.permute.xlu0 25
        %937 = vperm.xlu0 %936, %v187
        %v938 = vpop.permute.xlu0 %937
        %v940 = vmul.f32 %v938, %v742
        %v941 = vmul.f32 %v938, %v746
        %v942 = vmul.f32 %v938, %v750
        %v943 = vmul.f32 %v938, %v764
        %948 = vrot.lane.b32.xlu0 %v940, 91
        %v949 = vpop.permute.xlu0 %948
        %950 = vrot.lane.b32.xlu0 %v941, 91
        %v951 = vpop.permute.xlu0 %950
        %952 = vrot.lane.b32.xlu0 %v942, 91
        %v953 = vpop.permute.xlu0 %952
        %954 = vrot.lane.b32.xlu0 %v943, 91
        %v955 = vpop.permute.xlu0 %954
        %v956 = vsel %vm424, %v949, %v951
        %v957 = vsel %vm424, %v951, %v953
        %v958 = vsel %vm424, %v953, %v955
        %v962 = vadd.f32 %v933, %v956
        %v963 = vadd.f32 %v934, %v957
        %v964 = vadd.f32 %v935, %v958
        %965 = vset.pattern.permute.xlu0 26
        %966 = vperm.xlu0 %965, %v187
        %v967 = vpop.permute.xlu0 %966
        %v969 = vmul.f32 %v967, %v742
        %v970 = vmul.f32 %v967, %v746
        %v971 = vmul.f32 %v967, %v750
        %v972 = vmul.f32 %v967, %v764
        %977 = vrot.lane.b32.xlu0 %v969, 90
        %v978 = vpop.permute.xlu0 %977
        %979 = vrot.lane.b32.xlu0 %v970, 90
        %v980 = vpop.permute.xlu0 %979
        %981 = vrot.lane.b32.xlu0 %v971, 90
        %v982 = vpop.permute.xlu0 %981
        %983 = vrot.lane.b32.xlu0 %v972, 90
        %v984 = vpop.permute.xlu0 %983
        %v985 = vsel %vm454, %v978, %v980
        %v986 = vsel %vm454, %v980, %v982
        %v987 = vsel %vm454, %v982, %v984
        %v991 = vadd.f32 %v962, %v985
        %v992 = vadd.f32 %v963, %v986
        %v993 = vadd.f32 %v964, %v987
        %v994 = vadd.f32 %v729, %v991
        %v995 = vadd.f32 %v730, %v992
        %v996 = vadd.f32 %v731, %v993
        %s997 = scalar_lea.vmem %s164, 3 [#allocation2]
        %v998 = vld [vmem:[%s997] ss:$4 sm:$0xf]
        %999 = vset.pattern.permute.xlu0 27
        %1000 = vperm.xlu0 %999, %v187
        %v1001 = vpop.permute.xlu0 %1000
        %v1004 = vlaneseq
        %v1005 = vshrl.u32 %v1004, 7
        %v1006 = vsub.s32 0, %v1005
        %v1007 = vrot.slane %v998, %v1006
        %v1008 = vlaneseq
        %v1009 = vshrl.u32 %v1008, 7
        %v1010 = vsub.s32 1, %v1009
        %v1011 = vrot.slane %v998, %v1010
        %v1012 = vlaneseq
        %v1013 = vshrl.u32 %v1012, 7
        %v1014 = vsub.s32 2, %v1013
        %v1015 = vrot.slane %v998, %v1014
        %v1019 = vmul.f32 %v1001, %v1007
        %v1020 = vmul.f32 %v1001, %v1011
        %v1021 = vmul.f32 %v1001, %v1015
        %1022 = vset.pattern.permute.xlu0 28
        %1023 = vperm.xlu0 %1022, %v187
        %v1024 = vpop.permute.xlu0 %1023
        %v1026 = vlaneseq
        %v1027 = vshrl.u32 %v1026, 7
        %v1028 = vsub.s32 3, %v1027
        %v1029 = vrot.slane %v998, %v1028
        %v1031 = vmul.f32 %v1024, %v1007
        %v1032 = vmul.f32 %v1024, %v1011
        %v1033 = vmul.f32 %v1024, %v1015
        %v1034 = vmul.f32 %v1024, %v1029
        %1039 = vrot.lane.b32.xlu0 %v1031, 127
        %v1040 = vpop.permute.xlu0 %1039
        %1041 = vrot.lane.b32.xlu0 %v1032, 127
        %v1042 = vpop.permute.xlu0 %1041
        %1043 = vrot.lane.b32.xlu0 %v1033, 127
        %v1044 = vpop.permute.xlu0 %1043
        %1045 = vrot.lane.b32.xlu0 %v1034, 127
        %v1046 = vpop.permute.xlu0 %1045
        %v1047 = vsel %vm244, %v1040, %v1042
        %v1048 = vsel %vm244, %v1042, %v1044
        %v1049 = vsel %vm244, %v1044, %v1046
        %v1053 = vadd.f32 %v1019, %v1047
        %v1054 = vadd.f32 %v1020, %v1048
        %v1055 = vadd.f32 %v1021, %v1049
        %1056 = vset.pattern.permute.xlu0 29
        %1057 = vperm.xlu0 %1056, %v187
        %v1058 = vpop.permute.xlu0 %1057
        %v1060 = vmul.f32 %v1058, %v1007
        %v1061 = vmul.f32 %v1058, %v1011
        %v1062 = vmul.f32 %v1058, %v1015
        %v1063 = vmul.f32 %v1058, %v1029
        %1068 = vrot.lane.b32.xlu0 %v1060, 126
        %v1069 = vpop.permute.xlu0 %1068
        %1070 = vrot.lane.b32.xlu0 %v1061, 126
        %v1071 = vpop.permute.xlu0 %1070
        %1072 = vrot.lane.b32.xlu0 %v1062, 126
        %v1073 = vpop.permute.xlu0 %1072
        %1074 = vrot.lane.b32.xlu0 %v1063, 126
        %v1075 = vpop.permute.xlu0 %1074
        %v1076 = vsel %vm274, %v1069, %v1071
        %v1077 = vsel %vm274, %v1071, %v1073
        %v1078 = vsel %vm274, %v1073, %v1075
        %v1082 = vadd.f32 %v1053, %v1076
        %v1083 = vadd.f32 %v1054, %v1077
        %v1084 = vadd.f32 %v1055, %v1078
        %1085 = vset.pattern.permute.xlu0 30
        %1086 = vperm.xlu0 %1085, %v187
        %v1087 = vpop.permute.xlu0 %1086
        %v1089 = vmul.f32 %v1087, %v1007
        %v1090 = vmul.f32 %v1087, %v1011
        %v1091 = vmul.f32 %v1087, %v1015
        %v1092 = vmul.f32 %v1087, %v1029
        %1097 = vrot.lane.b32.xlu0 %v1089, 110
        %v1098 = vpop.permute.xlu0 %1097
        %1099 = vrot.lane.b32.xlu0 %v1090, 110
        %v1100 = vpop.permute.xlu0 %1099
        %1101 = vrot.lane.b32.xlu0 %v1091, 110
        %v1102 = vpop.permute.xlu0 %1101
        %1103 = vrot.lane.b32.xlu0 %v1092, 110
        %v1104 = vpop.permute.xlu0 %1103
        %v1105 = vsel %vm304, %v1098, %v1100
        %v1106 = vsel %vm304, %v1100, %v1102
        %v1107 = vsel %vm304, %v1102, %v1104
        %v1111 = vadd.f32 %v1082, %v1105
        %v1112 = vadd.f32 %v1083, %v1106
        %v1113 = vadd.f32 %v1084, %v1107
        %1114 = vset.pattern.permute.xlu0 31
        %1115 = vperm.xlu0 %1114, %v187
        %v1116 = vpop.permute.xlu0 %1115
        %v1118 = vmul.f32 %v1116, %v1007
        %v1119 = vmul.f32 %v1116, %v1011
        %v1120 = vmul.f32 %v1116, %v1015
        %v1121 = vmul.f32 %v1116, %v1029
        %1126 = vrot.lane.b32.xlu0 %v1118, 109
        %v1127 = vpop.permute.xlu0 %1126
        %1128 = vrot.lane.b32.xlu0 %v1119, 109
        %v1129 = vpop.permute.xlu0 %1128
        %1130 = vrot.lane.b32.xlu0 %v1120, 109
        %v1131 = vpop.permute.xlu0 %1130
        %1132 = vrot.lane.b32.xlu0 %v1121, 109
        %v1133 = vpop.permute.xlu0 %1132
        %v1134 = vsel %vm334, %v1127, %v1129
        %v1135 = vsel %vm334, %v1129, %v1131
        %v1136 = vsel %vm334, %v1131, %v1133
        %v1140 = vadd.f32 %v1111, %v1134
        %v1141 = vadd.f32 %v1112, %v1135
        %v1142 = vadd.f32 %v1113, %v1136
        %1143 = vset.pattern.permute.xlu0 32
        %1144 = vperm.xlu0 %1143, %v187
        %v1145 = vpop.permute.xlu0 %1144
        %v1147 = vmul.f32 %v1145, %v1007
        %v1148 = vmul.f32 %v1145, %v1011
        %v1149 = vmul.f32 %v1145, %v1015
        %v1150 = vmul.f32 %v1145, %v1029
        %1155 = vrot.lane.b32.xlu0 %v1147, 108
        %v1156 = vpop.permute.xlu0 %1155
        %1157 = vrot.lane.b32.xlu0 %v1148, 108
        %v1158 = vpop.permute.xlu0 %1157
        %1159 = vrot.lane.b32.xlu0 %v1149, 108
        %v1160 = vpop.permute.xlu0 %1159
        %1161 = vrot.lane.b32.xlu0 %v1150, 108
        %v1162 = vpop.permute.xlu0 %1161
        %v1163 = vsel %vm364, %v1156, %v1158
        %v1164 = vsel %vm364, %v1158, %v1160
        %v1165 = vsel %vm364, %v1160, %v1162
        %v1169 = vadd.f32 %v1140, %v1163
        %v1170 = vadd.f32 %v1141, %v1164
        %v1171 = vadd.f32 %v1142, %v1165
        %1172 = vset.pattern.permute.xlu0 33
        %1173 = vperm.xlu0 %1172, %v187
        %v1174 = vpop.permute.xlu0 %1173
        %v1176 = vmul.f32 %v1174, %v1007
        %v1177 = vmul.f32 %v1174, %v1011
        %v1178 = vmul.f32 %v1174, %v1015
        %v1179 = vmul.f32 %v1174, %v1029
        %1184 = vrot.lane.b32.xlu0 %v1176, 92
        %v1185 = vpop.permute.xlu0 %1184
        %1186 = vrot.lane.b32.xlu0 %v1177, 92
        %v1187 = vpop.permute.xlu0 %1186
        %1188 = vrot.lane.b32.xlu0 %v1178, 92
        %v1189 = vpop.permute.xlu0 %1188
        %1190 = vrot.lane.b32.xlu0 %v1179, 92
        %v1191 = vpop.permute.xlu0 %1190
        %v1192 = vsel %vm394, %v1185, %v1187
        %v1193 = vsel %vm394, %v1187, %v1189
        %v1194 = vsel %vm394, %v1189, %v1191
        %v1198 = vadd.f32 %v1169, %v1192
        %v1199 = vadd.f32 %v1170, %v1193
        %v1200 = vadd.f32 %v1171, %v1194
        %1201 = vset.pattern.permute.xlu0 34
        %1202 = vperm.xlu0 %1201, %v187
        %v1203 = vpop.permute.xlu0 %1202
        %v1205 = vmul.f32 %v1203, %v1007
        %v1206 = vmul.f32 %v1203, %v1011
        %v1207 = vmul.f32 %v1203, %v1015
        %v1208 = vmul.f32 %v1203, %v1029
        %1213 = vrot.lane.b32.xlu0 %v1205, 91
        %v1214 = vpop.permute.xlu0 %1213
        %1215 = vrot.lane.b32.xlu0 %v1206, 91
        %v1216 = vpop.permute.xlu0 %1215
        %1217 = vrot.lane.b32.xlu0 %v1207, 91
        %v1218 = vpop.permute.xlu0 %1217
        %1219 = vrot.lane.b32.xlu0 %v1208, 91
        %v1220 = vpop.permute.xlu0 %1219
        %v1221 = vsel %vm424, %v1214, %v1216
        %v1222 = vsel %vm424, %v1216, %v1218
        %v1223 = vsel %vm424, %v1218, %v1220
        %v1227 = vadd.f32 %v1198, %v1221
        %v1228 = vadd.f32 %v1199, %v1222
        %v1229 = vadd.f32 %v1200, %v1223
        %1230 = vset.pattern.permute.xlu0 35
        %1231 = vperm.xlu0 %1230, %v187
        %v1232 = vpop.permute.xlu0 %1231
        %v1234 = vmul.f32 %v1232, %v1007
        %v1235 = vmul.f32 %v1232, %v1011
        %v1236 = vmul.f32 %v1232, %v1015
        %v1237 = vmul.f32 %v1232, %v1029
        %1242 = vrot.lane.b32.xlu0 %v1234, 90
        %v1243 = vpop.permute.xlu0 %1242
        %1244 = vrot.lane.b32.xlu0 %v1235, 90
        %v1245 = vpop.permute.xlu0 %1244
        %1246 = vrot.lane.b32.xlu0 %v1236, 90
        %v1247 = vpop.permute.xlu0 %1246
        %1248 = vrot.lane.b32.xlu0 %v1237, 90
        %v1249 = vpop.permute.xlu0 %1248
        %v1250 = vsel %vm454, %v1243, %v1245
        %v1251 = vsel %vm454, %v1245, %v1247
        %v1252 = vsel %vm454, %v1247, %v1249
        %v1256 = vadd.f32 %v1227, %v1250
        %v1257 = vadd.f32 %v1228, %v1251
        %v1258 = vadd.f32 %v1229, %v1252
        %v1259 = vadd.f32 %v994, %v1256
        %v1260 = vadd.f32 %v995, %v1257
        %v1261 = vadd.f32 %v996, %v1258
        %v1264 = vcombine.low %v1259, %v1260
        %1266 = vst [vmem:[%s186] sm:$0xff] %v1264
        %1267 = vst [vmem:[%s186 + $0x8] sm:$0xf] %v1261
        %s1268 = sand.u32 %s96, 1
        %s1269 = scalar_lea.sflag [#allocation4], %s1268
        %s1270 = sand.u32 %s96, 1
        %s1271 = smul.addr %s1270, 12
        %s1272 = scalar_lea.vmem [#allocation5], %s1271
        // Predicated region
        $region37: #{tpu_custom_call.1} parent=31 // pred_check
          %p1273 = pneg %p106
        $region38: #{tpu_custom_call.1} parent=31 // pred_check_branch
          %1275 = sbr.rel (%p1273) target = $region40
        $region39: #{tpu_custom_call.1} parent=31 // pred_region
          %s1277 = ssub.s32 192, 192
          %1278 = vsyncadd %s1269, %s1277
          %s1279 = smul.addr %s20, 3
          %s1280 = smul.addr %s1279, 64
          %s1281 = scalar_lea.hbm %s3, %s1280
          %s1283 = sshll.u32 %s1272, 4
          %s1284 = int_to_ptr.vmem [resolvable:$true] %s1283
          %1286 = dma.vmem_to_hbm [thread:$0]  %s1284, 192, %s1281, %s1269
        $region40: #{tpu_custom_call.1} parent=31 // pred_fallthru
          _
      $region32: #{tpu_custom_call.1} parent=5 // pred_fallthru
        _
      %p1287 = scmp.le.s32.totalorder 2, %s15
      // Predicated region
      $region41: #{tpu_custom_call.1} parent=5 // pred_check
        %p1288 = pneg %p1287
      $region42: #{tpu_custom_call.1} parent=5 // pred_check_branch
        %1290 = sbr.rel (%p1288) target = $region44
      $region43: #{tpu_custom_call.1} parent=5 // pred_region
        %s1291 = ssub.s32 %s15, 2
        // Predicated region
        $region45: #{tpu_custom_call.1} parent=43 // pred_check
          %p1292 = pneg %p112
        $region46: #{tpu_custom_call.1} parent=43 // pred_check_branch
          %1294 = sbr.rel (%p1292) target = $region48
        $region47: #{tpu_custom_call.1} parent=43 // pred_region
          %s1295 = sand.u32 %s97, 1
          %s1296 = scalar_lea.sflag [#allocation4], %s1295
          %s1297 = sand.u32 %s97, 1
          %s1298 = smul.addr %s1297, 12
          %s1299 = scalar_lea.vmem [#allocation5], %s1298
          %1300 = dma.done %s1296, 192
        $region48: #{tpu_custom_call.1} parent=43 // pred_fallthru
          _
      $region44: #{tpu_custom_call.1} parent=5 // pred_fallthru
        _
    $region6: #{tpu_custom_call.1} parent=1 // loop_footer
      %s19 = sadd.s32 1, %s15
    $region7: #{tpu_custom_call.1} parent=1 // loop_footer_branch
      %14 = sbr.rel target = $region3
    $region8: #{tpu_custom_call.1} parent=1 // loop_exit
      _
    %1301 = vsyncpa [#allocation3], 1
    %s1302 = scalar_lea.sflag [#allocation3], 1
    %1303 = vsyncpa %s1302, 1
    %1304 = vsyncpa [#allocation4], 1
    %s1305 = scalar_lea.sflag [#allocation4], 1
    %1306 = vsyncpa %s1305, 1

</llo_original>
